<compile_context>
chip_gen: v5e
topology: v5e:2x2
jax: 0.10.0
libtpu: 0.0.40
codegen_flags: <defaults>
</compile_context>

<pallas_src>
import jax
import jax.numpy as jnp
from jax.experimental import pallas as pl
from jax.experimental.pallas import tpu as pltpu


def cnnet_kernel(x_ref, w1_ref, b1_ref, w2_ref, b2_ref, w3_ref, b3_ref,
                 wfc_ref, bfc_ref, out_ref):
    TB, L, _ = x_ref.shape
    M = TB * L

    def taps(h):
        """h: (M, C) f32 with M = TB*L.  Returns per-sample shifted copies
        (zero-padded at each sample's boundary, matching Conv1d pad=1)."""
        Mr, C = h.shape
        zrow = jnp.zeros((1, C), jnp.float32)
        down = jnp.concatenate([zrow, h[:Mr - 1, :]], axis=0)   # row m <- h[m-1]
        up = jnp.concatenate([h[1:, :], zrow], axis=0)          # row m <- h[m+1]
        # position of each row inside its sample (0..L-1)
        lidx = jax.lax.broadcasted_iota(jnp.int32, (TB, L, C), 1).reshape(Mr, C)
        h_prev = jnp.where(lidx == 0, 0.0, down)                # zero at l == 0
        h_next = jnp.where(lidx == L - 1, 0.0, up)              # zero at l == L-1
        return h_prev, h_next

    # ---- layer 1: Conv1d(1 -> 32, k=3, pad=1) + ReLU, on the VPU.
    # K=1 matmuls are outer products; broadcast FMAs are cheaper and keep the
    # MXU free for layers 2/3.
    x = x_ref[...].astype(jnp.float32).reshape(M, 1)            # (M, 1)
    x_prev, x_next = taps(x)
    h = (x_prev * w1_ref[0] + x * w1_ref[1] + x_next * w1_ref[2]) + b1_ref[...]
    h = jnp.maximum(h, 0.0)                                     # (M, 32) f32

    # ---- layers 2 & 3: MXU matmuls, bf16 operands, f32 accumulation.
    def conv_relu_mxu(h_in, w_ref, b_ref):
        h_prev, h_next = taps(h_in)
        acc = jnp.dot(h_prev.astype(jnp.bfloat16), w_ref[0],
                      preferred_element_type=jnp.float32)
        acc += jnp.dot(h_in.astype(jnp.bfloat16), w_ref[1],
                       preferred_element_type=jnp.float32)
        acc += jnp.dot(h_next.astype(jnp.bfloat16), w_ref[2],
                       preferred_element_type=jnp.float32)
        return jnp.maximum(acc + b_ref[...], 0.0)

    h = conv_relu_mxu(h, w2_ref, b2_ref)                        # (M, 64)
    h = conv_relu_mxu(h, w3_ref, b3_ref)                        # (M, 128)

    # ---- AdaptiveAvgPool1d(1): per-sample mean over the length axis.
    pooled = jnp.mean(h.reshape(TB, L, 128), axis=1)            # (TB, 128) f32

    # ---- FC (128 -> C_pad), lane-dense (128-wide) output store.
    logits = jnp.dot(pooled.astype(jnp.bfloat16), wfc_ref[...],
                     preferred_element_type=jnp.float32) + bfc_ref[...]
    out_ref[0] = logits                                         # (TB, C_pad)


def cnnet_forward(x, params):
    """x: (B, L) float32 -> (B, num_class) float32."""
    (w1, b1), (w2, b2), (w3, b3), (wfc, bfc) = params
    B, L = x.shape
    C = wfc.shape[1]
    C_pad = pl.cdiv(C, 128) * 128                      # lane-dense output width

    # TB samples per grid step: aim for ~512 matmul rows (fills MXU M on all
    # generations, stays well inside v7x's 64 MiB VMEM), but keep >= 2 grid
    # steps whenever B >= 2 so v7x can split the batch across its 2 TCs.
    TB = max(1, min(512 // max(L, 1), (B + 1) // 2))
    num_blocks = pl.cdiv(B, TB)
    B_pad = num_blocks * TB

    x_nlc = x[:, :, None].astype(jnp.float32)          # channels-last (B, L, 1)
    if B_pad != B:
        x_nlc = jnp.pad(x_nlc, ((0, B_pad - B), (0, 0), (0, 0)))

    # dtype prep: MXU operands in bf16, elementwise operands stay f32.
    w1f = w1.astype(jnp.float32)                       # VPU layer (Cin = 1)
    w2h = w2.astype(jnp.bfloat16)
    w3h = w3.astype(jnp.bfloat16)
    wfc_p = jnp.zeros((128, C_pad), jnp.bfloat16).at[:, :C].set(
        wfc.astype(jnp.bfloat16))
    bfc_p = jnp.zeros((1, C_pad), jnp.float32).at[:, :C].set(
        bfc.astype(jnp.float32))
    b1f, b2f, b3f = (b1.astype(jnp.float32), b2.astype(jnp.float32),
                     b3.astype(jnp.float32))

    def full(arr):
        nd = arr.ndim
        return pl.BlockSpec(arr.shape, lambda b, _nd=nd: (0,) * _nd)

    flops = (2 * B_pad * L * 3 * (1 * 32 + 32 * 64 + 64 * 128)
             + 2 * B_pad * 128 * C_pad)
    bytes_accessed = int(
        x_nlc.size * 4 + B_pad * C_pad * 4
        + w1f.size * 4 + w2h.size * 2 + w3h.size * 2 + wfc_p.size * 2
        + b1f.size * 4 + b2f.size * 4 + b3f.size * 4 + bfc_p.size * 4)
    cost = pl.CostEstimate(flops=flops, transcendentals=0,
                           bytes_accessed=bytes_accessed)

    out = pl.pallas_call(
        cnnet_kernel,
        out_shape=jax.ShapeDtypeStruct((num_blocks, TB, C_pad), jnp.float32),
        grid_spec=pltpu.PrefetchScalarGridSpec(
            num_scalar_prefetch=0,
            grid=(num_blocks,),
            in_specs=[
                pl.BlockSpec((TB, L, 1), lambda b: (b, 0, 0)),   # x block
                full(w1f), full(b1f),
                full(w2h), full(b2f),
                full(w3h), full(b3f),
                full(wfc_p), full(bfc_p),
            ],
            out_specs=pl.BlockSpec((1, TB, C_pad), lambda b: (b, 0, 0)),
        ),
        compiler_params=pltpu.CompilerParams(
            dimension_semantics=("parallel",),
            vmem_limit_bytes=32 * 1024 * 1024),
        cost_estimate=cost,
    )(x_nlc, w1f, b1f, w2h, b2f, w3h, b3f, wfc_p, bfc_p)

    return out.reshape(B_pad, C_pad)[:B, :C]


def init_params(key, num_class):
    """Deterministic init; conv weights stored as (k, Cin, Cout), biases (1, Cout)."""
    def uconv(k, kk, cin, cout):
        bound = 1.0 / (cin * kk) ** 0.5
        kw, kb = jax.random.split(k)
        w = jax.random.uniform(kw, (kk, cin, cout), jnp.float32, -bound, bound)
        b = jax.random.uniform(kb, (1, cout), jnp.float32, -bound, bound)
        return w, b

    def ulin(k, cin, cout):
        bound = 1.0 / cin ** 0.5
        kw, kb = jax.random.split(k)
        w = jax.random.uniform(kw, (cin, cout), jnp.float32, -bound, bound)
        b = jax.random.uniform(kb, (1, cout), jnp.float32, -bound, bound)
        return w, b

    k1, k2, k3, k4 = jax.random.split(key, 4)
    return (uconv(k1, 3, 1, 32), uconv(k2, 3, 32, 64),
            uconv(k3, 3, 64, 128), ulin(k4, 128, num_class))


def ref_forward(x, params, mxu_dtype=jnp.bfloat16):
    """Pure-jnp reference with identical semantics.  The layer-2/3/FC matmul
    operands are cast to `mxu_dtype` (f32 accumulation) to mirror the kernel's
    bf16-on-MXU choice; layer 1 and all elementwise math stay f32."""
    (w1, b1), (w2, b2), (w3, b3), (wfc, bfc) = params
    h = x[:, :, None].astype(jnp.float32)
    B, L, _ = h.shape

    # layer 1 (f32, matches the kernel's VPU path)
    hp = jnp.pad(h, ((0, 0), (1, 1), (0, 0)))
    acc = sum(jnp.einsum('blc,co->blo', hp[:, k:k + L, :], w1[k])
              for k in range(3))
    h = jnp.maximum(acc + b1[None, :, :], 0.0)

    # layers 2 & 3 (bf16 operands, f32 accumulation)
    for w, b in ((w2, b2), (w3, b3)):
        hp = jnp.pad(h, ((0, 0), (1, 1), (0, 0)))
        acc = sum(jnp.einsum('blc,co->blo',
                             hp[:, k:k + L, :].astype(mxu_dtype),
                             w[k].astype(mxu_dtype),
                             preferred_element_type=jnp.float32)
                  for k in range(3))
        h = jnp.maximum(acc + b[None, :, :], 0.0)

    pooled = h.mean(axis=1)                                      # (B, 128)
    return (jnp.dot(pooled.astype(mxu_dtype), wfc.astype(mxu_dtype),
                    preferred_element_type=jnp.float32)
            + bfc.astype(jnp.float32))


if __name__ == "__main__":
    key = jax.random.PRNGKey(0)
    kx, kp = jax.random.split(key)

    B, L, NUM_CLASS = 5, 16, 10          # exercises TB>1, batch padding, 2 grid steps
    x = jax.random.normal(kx, (B, L), jnp.float32)
    params = init_params(kp, NUM_CLASS)

    out = cnnet_forward(x, params)
    jax.block_until_ready(out)

    ref = ref_forward(x, params)
    assert out.shape == (B, NUM_CLASS)
    assert jnp.allclose(out, ref, atol=2e-2, rtol=2e-2), (out, ref)
    print("KERNEL_OK")
</pallas_src>

<mosaic_0001>
module attributes {stable_mosaic.version = 11 : i64} {
  func.func @cnnet_kernel(%arg0: i32, %arg1: memref<3x16x1xf32, #tpu.memory_space<vmem>>, %arg2: memref<3x1x32xf32, #tpu.memory_space<vmem>>, %arg3: memref<1x32xf32, #tpu.memory_space<vmem>>, %arg4: memref<3x32x64xbf16, #tpu.memory_space<vmem>>, %arg5: memref<1x64xf32, #tpu.memory_space<vmem>>, %arg6: memref<3x64x128xbf16, #tpu.memory_space<vmem>>, %arg7: memref<1x128xf32, #tpu.memory_space<vmem>>, %arg8: memref<128x128xbf16, #tpu.memory_space<vmem>>, %arg9: memref<1x128xf32, #tpu.memory_space<vmem>>, %arg10: memref<1x3x128xf32, #tpu.memory_space<vmem>>) attributes {dimension_semantics = [#tpu.dimension_semantics<parallel>], iteration_bounds = array<i64: 2>, scalar_prefetch = 0 : i64, scratch_operands = 0 : i64, tpu.core_type = #tpu.core_type<tc>, window_params = [{transform_indices = @transform_0, window_bounds = array<i64: 3, 16, 1>}, {pipeline_mode = #tpu.pipeline_mode<synchronous>, transform_indices = @transform_1, window_bounds = array<i64: 3, 1, 32>}, {pipeline_mode = #tpu.pipeline_mode<synchronous>, transform_indices = @transform_2, window_bounds = array<i64: 1, 32>}, {pipeline_mode = #tpu.pipeline_mode<synchronous>, transform_indices = @transform_3, window_bounds = array<i64: 3, 32, 64>}, {pipeline_mode = #tpu.pipeline_mode<synchronous>, transform_indices = @transform_4, window_bounds = array<i64: 1, 64>}, {pipeline_mode = #tpu.pipeline_mode<synchronous>, transform_indices = @transform_5, window_bounds = array<i64: 3, 64, 128>}, {pipeline_mode = #tpu.pipeline_mode<synchronous>, transform_indices = @transform_6, window_bounds = array<i64: 1, 128>}, {pipeline_mode = #tpu.pipeline_mode<synchronous>, transform_indices = @transform_7, window_bounds = array<i64: 128, 128>}, {pipeline_mode = #tpu.pipeline_mode<synchronous>, transform_indices = @transform_8, window_bounds = array<i64: 1, 128>}, {transform_indices = @transform_9, window_bounds = array<i64: 1, 3, 128>}]} {
    %c0 = arith.constant 0 : index
    %c0_0 = arith.constant 0 : index
    %c0_1 = arith.constant 0 : index
    %0 = vector.load %arg1[%c0, %c0_0, %c0_1] : memref<3x16x1xf32, #tpu.memory_space<vmem>>, vector<3x16x1xf32>
    %1 = vector.shape_cast %0 : vector<3x16x1xf32> to vector<48x1xf32>
    %cst = arith.constant 0.000000e+00 : f32
    %2 = vector.broadcast %cst : f32 to vector<1x1xf32>
    %3 = vector.extract_strided_slice %1 {offsets = [0, 0], sizes = [47, 1], strides = [1, 1]} : vector<48x1xf32> to vector<47x1xf32>
    %4 = tpu.concatenate %2, %3 in 0 : vector<1x1xf32>, vector<47x1xf32> -> vector<48x1xf32>
    %5 = vector.extract_strided_slice %1 {offsets = [1, 0], sizes = [47, 1], strides = [1, 1]} : vector<48x1xf32> to vector<47x1xf32>
    %6 = tpu.concatenate %5, %2 in 0 : vector<47x1xf32>, vector<1x1xf32> -> vector<48x1xf32>
    %7 = tpu.iota {dimensions = array<i32: 1>} : vector<3x16x1xi32>
    %8 = vector.shape_cast %7 : vector<3x16x1xi32> to vector<48x1xi32>
    %c0_i32 = arith.constant 0 : i32
    %9 = vector.broadcast %c0_i32 : i32 to vector<48x1xi32>
    %10 = arith.cmpi eq, %8, %9 : vector<48x1xi32>
    %cst_2 = arith.constant 0.000000e+00 : f32
    %11 = vector.broadcast %cst_2 : f32 to vector<48x1xf32>
    %12 = arith.select %10, %11, %4 : vector<48x1xi1>, vector<48x1xf32>
    %c15_i32 = arith.constant 15 : i32
    %13 = vector.broadcast %c15_i32 : i32 to vector<48x1xi32>
    %14 = arith.cmpi eq, %8, %13 : vector<48x1xi32>
    %cst_3 = arith.constant 0.000000e+00 : f32
    %15 = vector.broadcast %cst_3 : f32 to vector<48x1xf32>
    %16 = arith.select %14, %15, %6 : vector<48x1xi1>, vector<48x1xf32>
    %c0_4 = arith.constant 0 : index
    %c0_5 = arith.constant 0 : index
    %c0_6 = arith.constant 0 : index
    %17 = vector.load %arg2[%c0_4, %c0_5, %c0_6] : memref<3x1x32xf32, #tpu.memory_space<vmem>>, vector<1x1x32xf32>
    %18 = vector.shape_cast %17 : vector<1x1x32xf32> to vector<1x32xf32>
    %19 = vector.broadcast %12 : vector<48x1xf32> to vector<48x32xf32>
    %20 = vector.broadcast %18 : vector<1x32xf32> to vector<48x32xf32>
    %21 = arith.mulf %19, %20 : vector<48x32xf32>
    %c1 = arith.constant 1 : index
    %c0_7 = arith.constant 0 : index
    %c0_8 = arith.constant 0 : index
    %22 = vector.load %arg2[%c1, %c0_7, %c0_8] : memref<3x1x32xf32, #tpu.memory_space<vmem>>, vector<1x1x32xf32>
    %23 = vector.shape_cast %22 : vector<1x1x32xf32> to vector<1x32xf32>
    %24 = vector.broadcast %1 : vector<48x1xf32> to vector<48x32xf32>
    %25 = vector.broadcast %23 : vector<1x32xf32> to vector<48x32xf32>
    %26 = arith.mulf %24, %25 : vector<48x32xf32>
    %27 = arith.addf %21, %26 : vector<48x32xf32>
    %c2 = arith.constant 2 : index
    %c0_9 = arith.constant 0 : index
    %c0_10 = arith.constant 0 : index
    %28 = vector.load %arg2[%c2, %c0_9, %c0_10] : memref<3x1x32xf32, #tpu.memory_space<vmem>>, vector<1x1x32xf32>
    %29 = vector.shape_cast %28 : vector<1x1x32xf32> to vector<1x32xf32>
    %30 = vector.broadcast %16 : vector<48x1xf32> to vector<48x32xf32>
    %31 = vector.broadcast %29 : vector<1x32xf32> to vector<48x32xf32>
    %32 = arith.mulf %30, %31 : vector<48x32xf32>
    %33 = arith.addf %27, %32 : vector<48x32xf32>
    %c0_11 = arith.constant 0 : index
    %c0_12 = arith.constant 0 : index
    %34 = vector.load %arg3[%c0_11, %c0_12] : memref<1x32xf32, #tpu.memory_space<vmem>>, vector<1x32xf32>
    %35 = vector.broadcast %34 : vector<1x32xf32> to vector<48x32xf32>
    %36 = arith.addf %33, %35 : vector<48x32xf32>
    %cst_13 = arith.constant 0.000000e+00 : f32
    %37 = vector.broadcast %cst_13 : f32 to vector<48x32xf32>
    %38 = arith.maximumf %36, %37 : vector<48x32xf32>
    %cst_14 = arith.constant 0.000000e+00 : f32
    %39 = vector.broadcast %cst_14 : f32 to vector<1x32xf32>
    %40 = vector.extract_strided_slice %38 {offsets = [0, 0], sizes = [47, 32], strides = [1, 1]} : vector<48x32xf32> to vector<47x32xf32>
    %41 = tpu.concatenate %39, %40 in 0 : vector<1x32xf32>, vector<47x32xf32> -> vector<48x32xf32>
    %42 = vector.extract_strided_slice %38 {offsets = [1, 0], sizes = [47, 32], strides = [1, 1]} : vector<48x32xf32> to vector<47x32xf32>
    %43 = tpu.concatenate %42, %39 in 0 : vector<47x32xf32>, vector<1x32xf32> -> vector<48x32xf32>
    %44 = tpu.iota {dimensions = array<i32: 1>} : vector<3x16x32xi32>
    %45 = vector.shape_cast %44 : vector<3x16x32xi32> to vector<48x32xi32>
    %c0_i32_15 = arith.constant 0 : i32
    %46 = vector.broadcast %c0_i32_15 : i32 to vector<48x32xi32>
    %47 = arith.cmpi eq, %45, %46 : vector<48x32xi32>
    %cst_16 = arith.constant 0.000000e+00 : f32
    %48 = vector.broadcast %cst_16 : f32 to vector<48x32xf32>
    %49 = arith.select %47, %48, %41 : vector<48x32xi1>, vector<48x32xf32>
    %c15_i32_17 = arith.constant 15 : i32
    %50 = vector.broadcast %c15_i32_17 : i32 to vector<48x32xi32>
    %51 = arith.cmpi eq, %45, %50 : vector<48x32xi32>
    %cst_18 = arith.constant 0.000000e+00 : f32
    %52 = vector.broadcast %cst_18 : f32 to vector<48x32xf32>
    %53 = arith.select %51, %52, %43 : vector<48x32xi1>, vector<48x32xf32>
    %54 = arith.truncf %49 : vector<48x32xf32> to vector<48x32xbf16>
    %c0_19 = arith.constant 0 : index
    %c0_20 = arith.constant 0 : index
    %c0_21 = arith.constant 0 : index
    %55 = vector.load %arg4[%c0_19, %c0_20, %c0_21] : memref<3x32x64xbf16, #tpu.memory_space<vmem>>, vector<1x32x64xbf16>
    %56 = vector.shape_cast %55 : vector<1x32x64xbf16> to vector<32x64xbf16>
    %cst_22 = arith.constant dense<0.000000e+00> : vector<48x64xf32>
    %57 = tpu.matmul %54, %56, %cst_22 {dimension_numbers = #tpu.dot_dimension_numbers<[1], [0], [0], [1], [0, 0, 1, 1], [], []>} : vector<48x32xbf16>, vector<32x64xbf16>, vector<48x64xf32> -> vector<48x64xf32>
    %58 = arith.truncf %38 : vector<48x32xf32> to vector<48x32xbf16>
    %c1_23 = arith.constant 1 : index
    %c0_24 = arith.constant 0 : index
    %c0_25 = arith.constant 0 : index
    %59 = vector.load %arg4[%c1_23, %c0_24, %c0_25] : memref<3x32x64xbf16, #tpu.memory_space<vmem>>, vector<1x32x64xbf16>
    %60 = vector.shape_cast %59 : vector<1x32x64xbf16> to vector<32x64xbf16>
    %cst_26 = arith.constant dense<0.000000e+00> : vector<48x64xf32>
    %61 = tpu.matmul %58, %60, %cst_26 {dimension_numbers = #tpu.dot_dimension_numbers<[1], [0], [0], [1], [0, 0, 1, 1], [], []>} : vector<48x32xbf16>, vector<32x64xbf16>, vector<48x64xf32> -> vector<48x64xf32>
    %62 = arith.addf %57, %61 : vector<48x64xf32>
    %63 = arith.truncf %53 : vector<48x32xf32> to vector<48x32xbf16>
    %c2_27 = arith.constant 2 : index
    %c0_28 = arith.constant 0 : index
    %c0_29 = arith.constant 0 : index
    %64 = vector.load %arg4[%c2_27, %c0_28, %c0_29] : memref<3x32x64xbf16, #tpu.memory_space<vmem>>, vector<1x32x64xbf16>
    %65 = vector.shape_cast %64 : vector<1x32x64xbf16> to vector<32x64xbf16>
    %cst_30 = arith.constant dense<0.000000e+00> : vector<48x64xf32>
    %66 = tpu.matmul %63, %65, %cst_30 {dimension_numbers = #tpu.dot_dimension_numbers<[1], [0], [0], [1], [0, 0, 1, 1], [], []>} : vector<48x32xbf16>, vector<32x64xbf16>, vector<48x64xf32> -> vector<48x64xf32>
    %67 = arith.addf %62, %66 : vector<48x64xf32>
    %c0_31 = arith.constant 0 : index
    %c0_32 = arith.constant 0 : index
    %68 = vector.load %arg5[%c0_31, %c0_32] : memref<1x64xf32, #tpu.memory_space<vmem>>, vector<1x64xf32>
    %69 = vector.broadcast %68 : vector<1x64xf32> to vector<48x64xf32>
    %70 = arith.addf %67, %69 : vector<48x64xf32>
    %cst_33 = arith.constant 0.000000e+00 : f32
    %71 = vector.broadcast %cst_33 : f32 to vector<48x64xf32>
    %72 = arith.maximumf %70, %71 : vector<48x64xf32>
    %cst_34 = arith.constant 0.000000e+00 : f32
    %73 = vector.broadcast %cst_34 : f32 to vector<1x64xf32>
    %74 = vector.extract_strided_slice %72 {offsets = [0, 0], sizes = [47, 64], strides = [1, 1]} : vector<48x64xf32> to vector<47x64xf32>
    %75 = tpu.concatenate %73, %74 in 0 : vector<1x64xf32>, vector<47x64xf32> -> vector<48x64xf32>
    %76 = vector.extract_strided_slice %72 {offsets = [1, 0], sizes = [47, 64], strides = [1, 1]} : vector<48x64xf32> to vector<47x64xf32>
    %77 = tpu.concatenate %76, %73 in 0 : vector<47x64xf32>, vector<1x64xf32> -> vector<48x64xf32>
    %78 = tpu.iota {dimensions = array<i32: 1>} : vector<3x16x64xi32>
    %79 = vector.shape_cast %78 : vector<3x16x64xi32> to vector<48x64xi32>
    %c0_i32_35 = arith.constant 0 : i32
    %80 = vector.broadcast %c0_i32_35 : i32 to vector<48x64xi32>
    %81 = arith.cmpi eq, %79, %80 : vector<48x64xi32>
    %cst_36 = arith.constant 0.000000e+00 : f32
    %82 = vector.broadcast %cst_36 : f32 to vector<48x64xf32>
    %83 = arith.select %81, %82, %75 : vector<48x64xi1>, vector<48x64xf32>
    %c15_i32_37 = arith.constant 15 : i32
    %84 = vector.broadcast %c15_i32_37 : i32 to vector<48x64xi32>
    %85 = arith.cmpi eq, %79, %84 : vector<48x64xi32>
    %cst_38 = arith.constant 0.000000e+00 : f32
    %86 = vector.broadcast %cst_38 : f32 to vector<48x64xf32>
    %87 = arith.select %85, %86, %77 : vector<48x64xi1>, vector<48x64xf32>
    %88 = arith.truncf %83 : vector<48x64xf32> to vector<48x64xbf16>
    %c0_39 = arith.constant 0 : index
    %c0_40 = arith.constant 0 : index
    %c0_41 = arith.constant 0 : index
    %89 = vector.load %arg6[%c0_39, %c0_40, %c0_41] : memref<3x64x128xbf16, #tpu.memory_space<vmem>>, vector<1x64x128xbf16>
    %90 = vector.shape_cast %89 : vector<1x64x128xbf16> to vector<64x128xbf16>
    %cst_42 = arith.constant dense<0.000000e+00> : vector<48x128xf32>
    %91 = tpu.matmul %88, %90, %cst_42 {dimension_numbers = #tpu.dot_dimension_numbers<[1], [0], [0], [1], [0, 0, 1, 1], [], []>} : vector<48x64xbf16>, vector<64x128xbf16>, vector<48x128xf32> -> vector<48x128xf32>
    %92 = arith.truncf %72 : vector<48x64xf32> to vector<48x64xbf16>
    %c1_43 = arith.constant 1 : index
    %c0_44 = arith.constant 0 : index
    %c0_45 = arith.constant 0 : index
    %93 = vector.load %arg6[%c1_43, %c0_44, %c0_45] : memref<3x64x128xbf16, #tpu.memory_space<vmem>>, vector<1x64x128xbf16>
    %94 = vector.shape_cast %93 : vector<1x64x128xbf16> to vector<64x128xbf16>
    %cst_46 = arith.constant dense<0.000000e+00> : vector<48x128xf32>
    %95 = tpu.matmul %92, %94, %cst_46 {dimension_numbers = #tpu.dot_dimension_numbers<[1], [0], [0], [1], [0, 0, 1, 1], [], []>} : vector<48x64xbf16>, vector<64x128xbf16>, vector<48x128xf32> -> vector<48x128xf32>
    %96 = arith.addf %91, %95 : vector<48x128xf32>
    %97 = arith.truncf %87 : vector<48x64xf32> to vector<48x64xbf16>
    %c2_47 = arith.constant 2 : index
    %c0_48 = arith.constant 0 : index
    %c0_49 = arith.constant 0 : index
    %98 = vector.load %arg6[%c2_47, %c0_48, %c0_49] : memref<3x64x128xbf16, #tpu.memory_space<vmem>>, vector<1x64x128xbf16>
    %99 = vector.shape_cast %98 : vector<1x64x128xbf16> to vector<64x128xbf16>
    %cst_50 = arith.constant dense<0.000000e+00> : vector<48x128xf32>
    %100 = tpu.matmul %97, %99, %cst_50 {dimension_numbers = #tpu.dot_dimension_numbers<[1], [0], [0], [1], [0, 0, 1, 1], [], []>} : vector<48x64xbf16>, vector<64x128xbf16>, vector<48x128xf32> -> vector<48x128xf32>
    %101 = arith.addf %96, %100 : vector<48x128xf32>
    %c0_51 = arith.constant 0 : index
    %c0_52 = arith.constant 0 : index
    %102 = vector.load %arg7[%c0_51, %c0_52] : memref<1x128xf32, #tpu.memory_space<vmem>>, vector<1x128xf32>
    %103 = vector.broadcast %102 : vector<1x128xf32> to vector<48x128xf32>
    %104 = arith.addf %101, %103 : vector<48x128xf32>
    %cst_53 = arith.constant 0.000000e+00 : f32
    %105 = vector.broadcast %cst_53 : f32 to vector<48x128xf32>
    %106 = arith.maximumf %104, %105 : vector<48x128xf32>
    %107 = vector.shape_cast %106 : vector<48x128xf32> to vector<3x16x128xf32>
    %cst_54 = arith.constant dense<0.000000e+00> : vector<3x128xf32>
    %108 = vector.multi_reduction <add>, %107, %cst_54 [1] : vector<3x16x128xf32> to vector<3x128xf32>
    %cst_55 = arith.constant 1.600000e+01 : f32
    %109 = vector.broadcast %cst_55 : f32 to vector<3x128xf32>
    %110 = arith.divf %108, %109 : vector<3x128xf32>
    %111 = arith.truncf %110 : vector<3x128xf32> to vector<3x128xbf16>
    %c0_56 = arith.constant 0 : index
    %c0_57 = arith.constant 0 : index
    %112 = vector.load %arg8[%c0_56, %c0_57] : memref<128x128xbf16, #tpu.memory_space<vmem>>, vector<128x128xbf16>
    %cst_58 = arith.constant dense<0.000000e+00> : vector<3x128xf32>
    %113 = tpu.matmul %111, %112, %cst_58 {dimension_numbers = #tpu.dot_dimension_numbers<[1], [0], [0], [1], [0, 0, 1, 1], [], []>} : vector<3x128xbf16>, vector<128x128xbf16>, vector<3x128xf32> -> vector<3x128xf32>
    %c0_59 = arith.constant 0 : index
    %c0_60 = arith.constant 0 : index
    %114 = vector.load %arg9[%c0_59, %c0_60] : memref<1x128xf32, #tpu.memory_space<vmem>>, vector<1x128xf32>
    %115 = vector.broadcast %114 : vector<1x128xf32> to vector<3x128xf32>
    %116 = arith.addf %113, %115 : vector<3x128xf32>
    %c0_61 = arith.constant 0 : index
    %c0_62 = arith.constant 0 : index
    %c0_63 = arith.constant 0 : index
    %117 = vector.load %arg10[%c0_61, %c0_62, %c0_63] : memref<1x3x128xf32, #tpu.memory_space<vmem>>, vector<1x3x128xf32>
    %118 = vector.shape_cast %117 : vector<1x3x128xf32> to vector<3x128xf32>
    %119 = vector.shape_cast %116 : vector<3x128xf32> to vector<1x3x128xf32>
    tpu.vector_store %arg10[%c0_61, %c0_62, %c0_63], %119 {strides = array<i32>} : memref<1x3x128xf32, #tpu.memory_space<vmem>>, vector<1x3x128xf32>,
    return
  }
  func.func @transform_0(%arg0: i32) -> (i32, i32, i32) {
    %c0_i32 = arith.constant 0 : i32
    %c0_i32_0 = arith.constant 0 : i32
    %c0_i32_1 = arith.constant 0 : i32
    return %arg0, %c0_i32, %c0_i32_0 : i32, i32, i32
  }
  func.func @transform_1(%arg0: i32) -> (i32, i32, i32) {
    %c0_i32 = arith.constant 0 : i32
    %c0_i32_0 = arith.constant 0 : i32
    %c0_i32_1 = arith.constant 0 : i32
    %c0_i32_2 = arith.constant 0 : i32
    return %c0_i32, %c0_i32_0, %c0_i32_1 : i32, i32, i32
  }
  func.func @transform_2(%arg0: i32) -> (i32, i32) {
    %c0_i32 = arith.constant 0 : i32
    %c0_i32_0 = arith.constant 0 : i32
    %c0_i32_1 = arith.constant 0 : i32
    return %c0_i32, %c0_i32_0 : i32, i32
  }
  func.func @transform_3(%arg0: i32) -> (i32, i32, i32) {
    %c0_i32 = arith.constant 0 : i32
    %c0_i32_0 = arith.constant 0 : i32
    %c0_i32_1 = arith.constant 0 : i32
    %c0_i32_2 = arith.constant 0 : i32
    return %c0_i32, %c0_i32_0, %c0_i32_1 : i32, i32, i32
  }
  func.func @transform_4(%arg0: i32) -> (i32, i32) {
    %c0_i32 = arith.constant 0 : i32
    %c0_i32_0 = arith.constant 0 : i32
    %c0_i32_1 = arith.constant 0 : i32
    return %c0_i32, %c0_i32_0 : i32, i32
  }
  func.func @transform_5(%arg0: i32) -> (i32, i32, i32) {
    %c0_i32 = arith.constant 0 : i32
    %c0_i32_0 = arith.constant 0 : i32
    %c0_i32_1 = arith.constant 0 : i32
    %c0_i32_2 = arith.constant 0 : i32
    return %c0_i32, %c0_i32_0, %c0_i32_1 : i32, i32, i32
  }
  func.func @transform_6(%arg0: i32) -> (i32, i32) {
    %c0_i32 = arith.constant 0 : i32
    %c0_i32_0 = arith.constant 0 : i32
    %c0_i32_1 = arith.constant 0 : i32
    return %c0_i32, %c0_i32_0 : i32, i32
  }
  func.func @transform_7(%arg0: i32) -> (i32, i32) {
    %c0_i32 = arith.constant 0 : i32
    %c0_i32_0 = arith.constant 0 : i32
    %c0_i32_1 = arith.constant 0 : i32
    return %c0_i32, %c0_i32_0 : i32, i32
  }
  func.func @transform_8(%arg0: i32) -> (i32, i32) {
    %c0_i32 = arith.constant 0 : i32
    %c0_i32_0 = arith.constant 0 : i32
    %c0_i32_1 = arith.constant 0 : i32
    return %c0_i32, %c0_i32_0 : i32, i32
  }
  func.func @transform_9(%arg0: i32) -> (i32, i32, i32) {
    %c0_i32 = arith.constant 0 : i32
    %c0_i32_0 = arith.constant 0 : i32
    %c0_i32_1 = arith.constant 0 : i32
    return %arg0, %c0_i32, %c0_i32_0 : i32, i32, i32
  }
}

</mosaic_0001>

<llo_original>
// kernel: tpu_custom_call.1
$region0: #{tpu_custom_call.1}
  #allocation0 [shape = 'u32[]', space=smem, size = 0x4, offset = 0x4, fixed_abs, tag = 'smem constant byte address 0x4 - core index']
  #allocation1 [shape = 'u32[72,128]{1,0:T(1,128)}', space=vmem, size = 0x9000, scoped, tag = 'internal scratch']
  %s0 = inlined_call_operand.vmem [shape: f32[6,16,1], index: 0, kind: input, shape index: {}]
  %s1 = inlined_call_operand.vmem [shape: f32[3,1,32], index: 1, kind: input, shape index: {}]
  %s2 = inlined_call_operand.vmem [shape: f32[1,32], index: 2, kind: input, shape index: {}]
  %s3 = inlined_call_operand.hbm [shape: bf16[3,32,64], index: 3, kind: input, shape index: {}]
  %s4 = inlined_call_operand.vmem [shape: f32[1,64], index: 4, kind: input, shape index: {}]
  %s5 = inlined_call_operand.vmem [shape: bf16[3,64,128], index: 5, kind: input, shape index: {}]
  %s6 = inlined_call_operand.vmem [shape: f32[1,128], index: 6, kind: input, shape index: {}]
  %s7 = inlined_call_operand.hbm [shape: bf16[128,128], index: 7, kind: input, shape index: {}]
  %s8 = inlined_call_operand.vmem [shape: f32[1,128], index: 8, kind: input, shape index: {}]
  %s9 = inlined_call_operand.vmem [shape: f32[2,3,128], index: 9, kind: output, shape index: {}]
  %s10 = sld [smem:[#allocation0]]
  $region77: #{tpu_custom_call.1} parent=0
    _
  %s12 = ssub.s32 1, %s10
  %s13 = scalar_select 0, %s12, %s10
  $region1: #{tpu_custom_call.1} parent=0
    #allocation2 [shape = 'u8[24576]{0}', space=vmem, size = 0x6000, scoped, tag = 'input window, operand 3, single buffered']
    #allocation3 [shape = 's32[2]{0}', space=sflag, size = 0x8, scoped, tag = 'scoped memory for tpu_custom_call.1']
    #allocation4 [shape = 'u8[32768]{0}', space=vmem, size = 0x8000, scoped, tag = 'input window, operand 7, single buffered']
    #allocation5 [shape = 's32[1]{0}', space=sflag, size = 0x4, scoped, tag = 'scoped memory for tpu_custom_call.1']
    %14 = vsyncpa [#allocation3], 0
    %15 = vsyncpa [#allocation5], 0
    loop: start=0, step=1, limit=4
    $region2: #{tpu_custom_call.1} parent=1 // loop_pre_header
      _
    $region3: #{tpu_custom_call.1} parent=1 // loop_header
      %s17 = sphi 0, %s21
      %p18 = scmp.ge.s32.totalorder %s17, 4
      %s27 = sphi 0, %s29
      %s30 = sphi 0, %s27
      %s31 = sphi 0, %s30
      %s47 = sphi 0, %s31
      %s51 = sphi 0, %s51
      %s53 = sphi 0, %s51
      %s54 = sphi 0, %s53
      %s68 = sphi 0, %s54
      %s72 = sphi 0, %s72
      %s74 = sphi 0, %s72
      %s75 = sphi 0, %s74
      %s89 = sphi 0, %s75
      %s93 = sphi 0, %s93
      %s95 = sphi 0, %s93
      %s96 = sphi 0, %s95
      %s110 = sphi 0, %s96
      %s114 = sphi 0, %s114
      %s116 = sphi 0, %s114
      %s117 = sphi 0, %s116
      %s131 = sphi 0, %s117
      %s135 = sphi 0, %s135
      %s137 = sphi 0, %s135
      %s138 = sphi 0, %s137
      %s152 = sphi 0, %s138
      %s156 = sphi 0, %s156
      %s158 = sphi 0, %s156
      %s159 = sphi 0, %s158
      %s173 = sphi 0, %s159
      %s177 = sphi 0, %s177
      %s179 = sphi 0, %s177
      %s180 = sphi 0, %s179
      %s194 = sphi 0, %s180
      %s198 = sphi 0, %s198
      %s200 = sphi 0, %s198
      %s201 = sphi 0, %s200
      %s215 = sphi 0, %s201
      %s221 = sphi 0, %s223
      %s224 = sphi 0, %s221
      %s225 = sphi 0, %s224
      %s241 = sphi 0, %s225
    $region4: #{tpu_custom_call.1} parent=1 // loop_header_branch
      %20 = sbr.rel (%p18) target = $region8
    $region5: #{tpu_custom_call.1} parent=1 // loop_body
      %s22 = ssub.s32 %s17, 1
      %s23 = ssub.s32 %s17, 2
      %s24 = sadd.s32 %s17, 1
      %s25 = ssub.s32 %s17, %s24
      %p26 = scmp.eq.s32.totalorder %s25, 0
      %s28 = sadd.s32 %s27, 1
      %s29 = scalar_select %p26, %s27, %s28
      %p32 = pneg %p26
      %p33 = scmp.eq.s32.totalorder %s17, 1
      %p34 = por %p32, %p33
      %p35 = scmp.ne.s32.totalorder %s27, %s30
      %p36 = scmp.eq.s32.totalorder %s17, 0
      %p37 = por %p35, %p36
      %p38 = scmp.ne.s32.totalorder %s27, %s30
      %p39 = scmp.eq.s32.totalorder %s22, 1
      %p40 = por %p38, %p39
      %p41 = scmp.ne.s32.totalorder %s30, %s31
      %p42 = scmp.eq.s32.totalorder %s22, 0
      %p43 = por %p41, %p42
      %p44 = scmp.ne.s32.totalorder %s30, %s31
      %p45 = scmp.eq.s32.totalorder %s23, 1
      %p46 = por %p44, %p45
      %p48 = scmp.ne.s32.totalorder %s31, %s47
      %p49 = scmp.eq.s32.totalorder %s23, 0
      %p50 = por %p48, %p49
      %s52 = sadd.s32 %s51, 1
      %p55 = scmp.eq.s32.totalorder %s17, 1
      %p56 = scmp.ne.s32.totalorder %s51, %s53
      %p57 = scmp.eq.s32.totalorder %s17, 0
      %p58 = por %p56, %p57
      %p59 = scmp.ne.s32.totalorder %s51, %s53
      %p60 = scmp.eq.s32.totalorder %s22, 1
      %p61 = por %p59, %p60
      %p62 = scmp.ne.s32.totalorder %s53, %s54
      %p63 = scmp.eq.s32.totalorder %s22, 0
      %p64 = por %p62, %p63
      %p65 = scmp.ne.s32.totalorder %s53, %s54
      %p66 = scmp.eq.s32.totalorder %s23, 1
      %p67 = por %p65, %p66
      %p69 = scmp.ne.s32.totalorder %s54, %s68
      %p70 = scmp.eq.s32.totalorder %s23, 0
      %p71 = por %p69, %p70
      %s73 = sadd.s32 %s72, 1
      %p76 = scmp.eq.s32.totalorder %s17, 1
      %p77 = scmp.ne.s32.totalorder %s72, %s74
      %p78 = scmp.eq.s32.totalorder %s17, 0
      %p79 = por %p77, %p78
      %p80 = scmp.ne.s32.totalorder %s72, %s74
      %p81 = scmp.eq.s32.totalorder %s22, 1
      %p82 = por %p80, %p81
      %p83 = scmp.ne.s32.totalorder %s74, %s75
      %p84 = scmp.eq.s32.totalorder %s22, 0
      %p85 = por %p83, %p84
      %p86 = scmp.ne.s32.totalorder %s74, %s75
      %p87 = scmp.eq.s32.totalorder %s23, 1
      %p88 = por %p86, %p87
      %p90 = scmp.ne.s32.totalorder %s75, %s89
      %p91 = scmp.eq.s32.totalorder %s23, 0
      %p92 = por %p90, %p91
      %s94 = sadd.s32 %s93, 1
      %p97 = scmp.eq.s32.totalorder %s17, 1
      %p98 = scmp.ne.s32.totalorder %s93, %s95
      %p99 = scmp.eq.s32.totalorder %s17, 0
      %p100 = por %p98, %p99
      %p101 = scmp.ne.s32.totalorder %s93, %s95
      %p102 = scmp.eq.s32.totalorder %s22, 1
      %p103 = por %p101, %p102
      %p104 = scmp.ne.s32.totalorder %s95, %s96
      %p105 = scmp.eq.s32.totalorder %s22, 0
      %p106 = por %p104, %p105
      %p107 = scmp.ne.s32.totalorder %s95, %s96
      %p108 = scmp.eq.s32.totalorder %s23, 1
      %p109 = por %p107, %p108
      %p111 = scmp.ne.s32.totalorder %s96, %s110
      %p112 = scmp.eq.s32.totalorder %s23, 0
      %p113 = por %p111, %p112
      %s115 = sadd.s32 %s114, 1
      %p118 = scmp.eq.s32.totalorder %s17, 1
      %p119 = scmp.ne.s32.totalorder %s114, %s116
      %p120 = scmp.eq.s32.totalorder %s17, 0
      %p121 = por %p119, %p120
      %p122 = scmp.ne.s32.totalorder %s114, %s116
      %p123 = scmp.eq.s32.totalorder %s22, 1
      %p124 = por %p122, %p123
      %p125 = scmp.ne.s32.totalorder %s116, %s117
      %p126 = scmp.eq.s32.totalorder %s22, 0
      %p127 = por %p125, %p126
      %p128 = scmp.ne.s32.totalorder %s116, %s117
      %p129 = scmp.eq.s32.totalorder %s23, 1
      %p130 = por %p128, %p129
      %p132 = scmp.ne.s32.totalorder %s117, %s131
      %p133 = scmp.eq.s32.totalorder %s23, 0
      %p134 = por %p132, %p133
      %s136 = sadd.s32 %s135, 1
      %p139 = scmp.eq.s32.totalorder %s17, 1
      %p140 = scmp.ne.s32.totalorder %s135, %s137
      %p141 = scmp.eq.s32.totalorder %s17, 0
      %p142 = por %p140, %p141
      %p143 = scmp.ne.s32.totalorder %s135, %s137
      %p144 = scmp.eq.s32.totalorder %s22, 1
      %p145 = por %p143, %p144
      %p146 = scmp.ne.s32.totalorder %s137, %s138
      %p147 = scmp.eq.s32.totalorder %s22, 0
      %p148 = por %p146, %p147
      %p149 = scmp.ne.s32.totalorder %s137, %s138
      %p150 = scmp.eq.s32.totalorder %s23, 1
      %p151 = por %p149, %p150
      %p153 = scmp.ne.s32.totalorder %s138, %s152
      %p154 = scmp.eq.s32.totalorder %s23, 0
      %p155 = por %p153, %p154
      %s157 = sadd.s32 %s156, 1
      %p160 = scmp.eq.s32.totalorder %s17, 1
      %p161 = scmp.ne.s32.totalorder %s156, %s158
      %p162 = scmp.eq.s32.totalorder %s17, 0
      %p163 = por %p161, %p162
      %p164 = scmp.ne.s32.totalorder %s156, %s158
      %p165 = scmp.eq.s32.totalorder %s22, 1
      %p166 = por %p164, %p165
      %p167 = scmp.ne.s32.totalorder %s158, %s159
      %p168 = scmp.eq.s32.totalorder %s22, 0
      %p169 = por %p167, %p168
      %p170 = scmp.ne.s32.totalorder %s158, %s159
      %p171 = scmp.eq.s32.totalorder %s23, 1
      %p172 = por %p170, %p171
      %p174 = scmp.ne.s32.totalorder %s159, %s173
      %p175 = scmp.eq.s32.totalorder %s23, 0
      %p176 = por %p174, %p175
      %s178 = sadd.s32 %s177, 1
      %p181 = scmp.eq.s32.totalorder %s17, 1
      %p182 = scmp.ne.s32.totalorder %s177, %s179
      %p183 = scmp.eq.s32.totalorder %s17, 0
      %p184 = por %p182, %p183
      %p185 = scmp.ne.s32.totalorder %s177, %s179
      %p186 = scmp.eq.s32.totalorder %s22, 1
      %p187 = por %p185, %p186
      %p188 = scmp.ne.s32.totalorder %s179, %s180
      %p189 = scmp.eq.s32.totalorder %s22, 0
      %p190 = por %p188, %p189
      %p191 = scmp.ne.s32.totalorder %s179, %s180
      %p192 = scmp.eq.s32.totalorder %s23, 1
      %p193 = por %p191, %p192
      %p195 = scmp.ne.s32.totalorder %s180, %s194
      %p196 = scmp.eq.s32.totalorder %s23, 0
      %p197 = por %p195, %p196
      %s199 = sadd.s32 %s198, 1
      %p202 = scmp.eq.s32.totalorder %s17, 1
      %p203 = scmp.ne.s32.totalorder %s198, %s200
      %p204 = scmp.eq.s32.totalorder %s17, 0
      %p205 = por %p203, %p204
      %p206 = scmp.ne.s32.totalorder %s198, %s200
      %p207 = scmp.eq.s32.totalorder %s22, 1
      %p208 = por %p206, %p207
      %p209 = scmp.ne.s32.totalorder %s200, %s201
      %p210 = scmp.eq.s32.totalorder %s22, 0
      %p211 = por %p209, %p210
      %p212 = scmp.ne.s32.totalorder %s200, %s201
      %p213 = scmp.eq.s32.totalorder %s23, 1
      %p214 = por %p212, %p213
      %p216 = scmp.ne.s32.totalorder %s201, %s215
      %p217 = scmp.eq.s32.totalorder %s23, 0
      %p218 = por %p216, %p217
      %s219 = ssub.s32 %s17, %s24
      %p220 = scmp.eq.s32.totalorder %s219, 0
      %s222 = sadd.s32 %s221, 1
      %s223 = scalar_select %p220, %s221, %s222
      %p226 = pneg %p220
      %p227 = scmp.eq.s32.totalorder %s17, 1
      %p228 = por %p226, %p227
      %p229 = scmp.ne.s32.totalorder %s221, %s224
      %p230 = scmp.eq.s32.totalorder %s17, 0
      %p231 = por %p229, %p230
      %p232 = scmp.ne.s32.totalorder %s221, %s224
      %p233 = scmp.eq.s32.totalorder %s22, 1
      %p234 = por %p232, %p233
      %p235 = scmp.ne.s32.totalorder %s224, %s225
      %p236 = scmp.eq.s32.totalorder %s22, 0
      %p237 = por %p235, %p236
      %p238 = scmp.ne.s32.totalorder %s224, %s225
      %p239 = scmp.eq.s32.totalorder %s23, 1
      %p240 = por %p238, %p239
      %p242 = scmp.ne.s32.totalorder %s225, %s241
      %p243 = scmp.eq.s32.totalorder %s23, 0
      %p244 = por %p242, %p243
      %p245 = scmp.le.s32.totalorder 1, %s17
      %p246 = scmp.lt.s32.totalorder %s17, 3
      %p247 = pnand %p245, %p246
      %p248 = pneg %p247
      // Predicated region
      $region9: #{tpu_custom_call.1} parent=5 // pred_check
        _
      $region10: #{tpu_custom_call.1} parent=5 // pred_check_branch
        %250 = sbr.rel (%p247) target = $region12
      $region11: #{tpu_custom_call.1} parent=5 // pred_region
        %s251 = ssub.s32 %s17, 1
        // Predicated region
        $region13: #{tpu_custom_call.1} parent=11 // pred_check
          %p252 = pneg %p64
        $region14: #{tpu_custom_call.1} parent=11 // pred_check_branch
          %254 = sbr.rel (%p252) target = $region16
        $region15: #{tpu_custom_call.1} parent=11 // pred_region
          _
        $region16: #{tpu_custom_call.1} parent=11 // pred_fallthru
          _
        // Predicated region
        $region17: #{tpu_custom_call.1} parent=11 // pred_check
          %p255 = pneg %p85
        $region18: #{tpu_custom_call.1} parent=11 // pred_check_branch
          %257 = sbr.rel (%p255) target = $region20
        $region19: #{tpu_custom_call.1} parent=11 // pred_region
          _
        $region20: #{tpu_custom_call.1} parent=11 // pred_fallthru
          _
        // Predicated region
        $region21: #{tpu_custom_call.1} parent=11 // pred_check
          %p258 = pneg %p106
        $region22: #{tpu_custom_call.1} parent=11 // pred_check_branch
          %260 = sbr.rel (%p258) target = $region24
        $region23: #{tpu_custom_call.1} parent=11 // pred_region
          %262 = vsyncadd [#allocation3], 0
          %s263 = sshll.u32 %s3, 4
          %s264 = int_to_ptr.hbm [resolvable:$true] %s263
          %s265 = sshll.u32 [#allocation2], 4
          %s266 = int_to_ptr.vmem [resolvable:$true] %s265
          %271 = dma.hbm_to_vmem [thread:$0]  %s264, 768, %s266, [#allocation3], 64, 64, 4
        $region24: #{tpu_custom_call.1} parent=11 // pred_fallthru
          _
        // Predicated region
        $region25: #{tpu_custom_call.1} parent=11 // pred_check
          %p272 = pneg %p127
        $region26: #{tpu_custom_call.1} parent=11 // pred_check_branch
          %274 = sbr.rel (%p272) target = $region28
        $region27: #{tpu_custom_call.1} parent=11 // pred_region
          _
        $region28: #{tpu_custom_call.1} parent=11 // pred_fallthru
          _
        // Predicated region
        $region29: #{tpu_custom_call.1} parent=11 // pred_check
          %p275 = pneg %p148
        $region30: #{tpu_custom_call.1} parent=11 // pred_check_branch
          %277 = sbr.rel (%p275) target = $region32
        $region31: #{tpu_custom_call.1} parent=11 // pred_region
          _
        $region32: #{tpu_custom_call.1} parent=11 // pred_fallthru
          _
        // Predicated region
        $region33: #{tpu_custom_call.1} parent=11 // pred_check
          %p278 = pneg %p169
        $region34: #{tpu_custom_call.1} parent=11 // pred_check_branch
          %280 = sbr.rel (%p278) target = $region36
        $region35: #{tpu_custom_call.1} parent=11 // pred_region
          _
        $region36: #{tpu_custom_call.1} parent=11 // pred_fallthru
          _
        // Predicated region
        $region37: #{tpu_custom_call.1} parent=11 // pred_check
          %p281 = pneg %p190
        $region38: #{tpu_custom_call.1} parent=11 // pred_check_branch
          %283 = sbr.rel (%p281) target = $region40
        $region39: #{tpu_custom_call.1} parent=11 // pred_region
          %285 = vsyncadd [#allocation5], 0
          %s286 = sshll.u32 %s7, 4
          %s287 = int_to_ptr.hbm [resolvable:$true] %s286
          %s288 = sshll.u32 [#allocation4], 4
          %s289 = int_to_ptr.vmem [resolvable:$true] %s288
          %294 = dma.hbm_to_vmem [thread:$0]  %s287, 1024, %s289, [#allocation5], 64, 64, 4
        $region40: #{tpu_custom_call.1} parent=11 // pred_fallthru
          _
        // Predicated region
        $region41: #{tpu_custom_call.1} parent=11 // pred_check
          %p295 = pneg %p211
        $region42: #{tpu_custom_call.1} parent=11 // pred_check_branch
          %297 = sbr.rel (%p295) target = $region44
        $region43: #{tpu_custom_call.1} parent=11 // pred_region
          _
        $region44: #{tpu_custom_call.1} parent=11 // pred_fallthru
          _
      $region12: #{tpu_custom_call.1} parent=5 // pred_fallthru
        _
      %p298 = scmp.lt.s32.totalorder %s17, 2
      // Predicated region
      $region45: #{tpu_custom_call.1} parent=5 // pred_check
        %p299 = pneg %p298
      $region46: #{tpu_custom_call.1} parent=5 // pred_check_branch
        %301 = sbr.rel (%p299) target = $region48
      $region47: #{tpu_custom_call.1} parent=5 // pred_region
        // Predicated region
        $region49: #{tpu_custom_call.1} parent=47 // pred_check
          %p302 = pneg %p37
        $region50: #{tpu_custom_call.1} parent=47 // pred_check_branch
          %304 = sbr.rel (%p302) target = $region52
        $region51: #{tpu_custom_call.1} parent=47 // pred_region
          %s305 = smul.u32 3, %s17
          %p306 = scmp.lt.s32.totalorder %s305, 5
          %s307 = scalar_select %p306, %s305, 5
          %s308 = smul.addr %s307, 2
          %s309 = smul.addr %s308, 8
          %s310 = scalar_lea.vmem %s0, %s309
          %s311 = smul.u32 3, %s17
        $region52: #{tpu_custom_call.1} parent=47 // pred_fallthru
          _
      $region48: #{tpu_custom_call.1} parent=5 // pred_fallthru
        _
      %p312 = scmp.le.s32.totalorder 1, %s17
      %p313 = scmp.lt.s32.totalorder %s17, 3
      %p314 = pnand %p312, %p313
      %p315 = pneg %p314
      // Predicated region
      $region53: #{tpu_custom_call.1} parent=5 // pred_check
        _
      $region54: #{tpu_custom_call.1} parent=5 // pred_check_branch
        %317 = sbr.rel (%p314) target = $region56
      $region55: #{tpu_custom_call.1} parent=5 // pred_region
        %s318 = ssub.s32 %s17, 1
        // Predicated region
        $region57: #{tpu_custom_call.1} parent=55 // pred_check
          %p319 = pneg %p106
        $region58: #{tpu_custom_call.1} parent=55 // pred_check_branch
          %321 = sbr.rel (%p319) target = $region60
        $region59: #{tpu_custom_call.1} parent=55 // pred_region
          %323 = dma.done [#allocation3], 768
        $region60: #{tpu_custom_call.1} parent=55 // pred_fallthru
          _
        // Predicated region
        $region61: #{tpu_custom_call.1} parent=55 // pred_check
          %p324 = pneg %p190
        $region62: #{tpu_custom_call.1} parent=55 // pred_check_branch
          %326 = sbr.rel (%p324) target = $region64
        $region63: #{tpu_custom_call.1} parent=55 // pred_region
          %328 = dma.done [#allocation5], 1024
        $region64: #{tpu_custom_call.1} parent=55 // pred_fallthru
          _
        %s329 = smul.u32 3, %s22
        %p330 = scmp.lt.s32.totalorder %s329, 5
        %s331 = scalar_select %p330, %s329, 5
        %s332 = smul.addr %s331, 2
        %s333 = smul.addr %s332, 8
        %s334 = scalar_lea.vmem %s0, %s333
        %p335 = pneg %p43
        %p336 = pneg %p40
        %p337 = pneg %p64
        %p338 = pneg %p61
        %p339 = pneg %p85
        %p340 = pneg %p82
        %p341 = pneg %p106
        %p342 = pneg %p103
        %p343 = pneg %p127
        %p344 = pneg %p124
        %p345 = pneg %p148
        %p346 = pneg %p145
        %p347 = pneg %p169
        %p348 = pneg %p166
        %p349 = pneg %p190
        %p350 = pneg %p187
        %p351 = pneg %p211
        %p352 = pneg %p208
        %p353 = pneg %p237
        %p354 = pneg %p234
        %p355 = scmp.lt.s32.totalorder %s22, 1
        %s356 = scalar_select %p355, %s22, 1
        %s357 = smul.addr %s356, 4
        %s358 = scalar_lea.vmem %s9, %s357
        %s359 = smul.u32 3, %s22
        %p360 = scmp.lt.s32.totalorder %s359, 5
        %s361 = scalar_select %p360, %s359, 5
        %s362 = smul.addr %s361, 2
        %s363 = smul.addr %s362, 8
        %s364 = scalar_lea.vmem %s0, %s363
        %s365 = smul.u32 3, %s22
        %p366 = scmp.lt.s32.totalorder %s22, 1
        %s367 = scalar_select %p366, %s22, 1
        %s368 = smul.addr %s367, 4
        %s369 = scalar_lea.vmem %s9, %s368
        %v371 = vld [vmem:[%s364] sm:$0xff]
        %v372 = vld [vmem:[%s364 + $0x8] sm:$0xff]
        %v373 = vld [vmem:[%s364 + $0x10] sm:$0xff]
        %v374 = vld [vmem:[%s364 + $0x18] sm:$0xff]
        %v375 = vld [vmem:[%s364 + $0x20] sm:$0xff]
        %v376 = vld [vmem:[%s364 + $0x28] sm:$0xff]
        %vm383 = vcmask 1040384
        %v384 = vrot.slane %v371, 7
        %v385 = vrot.slane %v372, 7
        %v386 = vsel %vm383, %v384, %v385
        %v387 = vrot.slane %v373, 7
        %v388 = vsel %vm383, %v385, %v387
        %v389 = vrot.slane %v374, 7
        %v390 = vsel %vm383, %v387, %v389
        %v391 = vrot.slane %v375, 7
        %v392 = vsel %vm383, %v389, %v391
        %v393 = vrot.slane %v376, 7
        %v394 = vsel %vm383, %v391, %v393
        %v401 = vsel %vm383, 0.0, %v384
        %vm402 = vcmask 1046528
        %v403 = vrot.slane %v371, 1
        %v404 = vrot.slane %v372, 1
        %v405 = vsel %vm402, %v403, %v404
        %v406 = vrot.slane %v373, 1
        %v407 = vsel %vm402, %v404, %v406
        %v408 = vrot.slane %v374, 1
        %v409 = vsel %vm402, %v406, %v408
        %v410 = vrot.slane %v375, 1
        %v411 = vsel %vm402, %v408, %v410
        %v412 = vrot.slane %v376, 1
        %v413 = vsel %vm402, %v410, %v412
        %v420 = vsel %vm402, %v412, 0.0
        %v421 = vlaneseq
        %v422 = vshrl.u32 %v421, 7
        %v423 = vadd.s32 %v422, 8
        %vm424 = vcmp.eq.s32.totalorder %v422, 0
        %vm425 = vcmp.eq.s32.totalorder %v423, 0
        %v426 = vsel %vm424, 0.0, %v401
        %v427 = vsel %vm425, 0.0, %v386
        %v428 = vsel %vm424, 0.0, %v388
        %v429 = vsel %vm425, 0.0, %v390
        %v430 = vsel %vm424, 0.0, %v392
        %v431 = vsel %vm425, 0.0, %v394
        %vm432 = vcmp.eq.s32.totalorder %v422, 15
        %vm433 = vcmp.eq.s32.totalorder %v423, 15
        %v434 = vsel %vm432, 0.0, %v405
        %v435 = vsel %vm433, 0.0, %v407
        %v436 = vsel %vm432, 0.0, %v409
        %v437 = vsel %vm433, 0.0, %v411
        %v438 = vsel %vm432, 0.0, %v413
        %v439 = vsel %vm433, 0.0, %v420
        %v440 = vld [vmem:[%s1] sm:$0x1]
        %442 = vset.pattern.permute.xlu0 0
        %443 = vperm.xlu0 %442, %v426
        %v444 = vpop.permute.xlu0 %443
        %447 = vset.pattern.permute.xlu0 0
        %448 = vperm.xlu0 %447, %v427
        %v449 = vpop.permute.xlu0 %448
        %452 = vset.pattern.permute.xlu0 0
        %453 = vperm.xlu0 %452, %v428
        %v454 = vpop.permute.xlu0 %453
        %457 = vset.pattern.permute.xlu0 0
        %458 = vperm.xlu0 %457, %v429
        %v459 = vpop.permute.xlu0 %458
        %462 = vset.pattern.permute.xlu0 0
        %463 = vperm.xlu0 %462, %v430
        %v464 = vpop.permute.xlu0 %463
        %467 = vset.pattern.permute.xlu0 0
        %468 = vperm.xlu0 %467, %v431
        %v469 = vpop.permute.xlu0 %468
        %v472 = vperm.slane %v440, 0
        %v474 = vmul.f32 %v444, %v472
        %v475 = vmul.f32 %v449, %v472
        %v476 = vmul.f32 %v454, %v472
        %v477 = vmul.f32 %v459, %v472
        %v478 = vmul.f32 %v464, %v472
        %v479 = vmul.f32 %v469, %v472
        %s480 = scalar_lea.vmem %s1, 1
        %v481 = vld [vmem:[%s480] sm:$0x1]
        %482 = vset.pattern.permute.xlu0 0
        %483 = vperm.xlu0 %482, %v371
        %v484 = vpop.permute.xlu0 %483
        %486 = vset.pattern.permute.xlu0 0
        %487 = vperm.xlu0 %486, %v372
        %v488 = vpop.permute.xlu0 %487
        %490 = vset.pattern.permute.xlu0 0
        %491 = vperm.xlu0 %490, %v373
        %v492 = vpop.permute.xlu0 %491
        %494 = vset.pattern.permute.xlu0 0
        %495 = vperm.xlu0 %494, %v374
        %v496 = vpop.permute.xlu0 %495
        %498 = vset.pattern.permute.xlu0 0
        %499 = vperm.xlu0 %498, %v375
        %v500 = vpop.permute.xlu0 %499
        %502 = vset.pattern.permute.xlu0 0
        %503 = vperm.xlu0 %502, %v376
        %v504 = vpop.permute.xlu0 %503
        %v507 = vperm.slane %v481, 0
        %v509 = vmul.f32 %v484, %v507
        %v510 = vmul.f32 %v488, %v507
        %v511 = vmul.f32 %v492, %v507
        %v512 = vmul.f32 %v496, %v507
        %v513 = vmul.f32 %v500, %v507
        %v514 = vmul.f32 %v504, %v507
        %v515 = vadd.f32 %v474, %v509
        %v516 = vadd.f32 %v475, %v510
        %v517 = vadd.f32 %v476, %v511
        %v518 = vadd.f32 %v477, %v512
        %v519 = vadd.f32 %v478, %v513
        %v520 = vadd.f32 %v479, %v514
        %s521 = scalar_lea.vmem %s1, 2
        %v522 = vld [vmem:[%s521] sm:$0x1]
        %524 = vset.pattern.permute.xlu0 0
        %525 = vperm.xlu0 %524, %v434
        %v526 = vpop.permute.xlu0 %525
        %529 = vset.pattern.permute.xlu0 0
        %530 = vperm.xlu0 %529, %v435
        %v531 = vpop.permute.xlu0 %530
        %534 = vset.pattern.permute.xlu0 0
        %535 = vperm.xlu0 %534, %v436
        %v536 = vpop.permute.xlu0 %535
        %539 = vset.pattern.permute.xlu0 0
        %540 = vperm.xlu0 %539, %v437
        %v541 = vpop.permute.xlu0 %540
        %544 = vset.pattern.permute.xlu0 0
        %545 = vperm.xlu0 %544, %v438
        %v546 = vpop.permute.xlu0 %545
        %549 = vset.pattern.permute.xlu0 0
        %550 = vperm.xlu0 %549, %v439
        %v551 = vpop.permute.xlu0 %550
        %v554 = vperm.slane %v522, 0
        %v556 = vmul.f32 %v526, %v554
        %v557 = vmul.f32 %v531, %v554
        %v558 = vmul.f32 %v536, %v554
        %v559 = vmul.f32 %v541, %v554
        %v560 = vmul.f32 %v546, %v554
        %v561 = vmul.f32 %v551, %v554
        %v562 = vadd.f32 %v515, %v556
        %v563 = vadd.f32 %v516, %v557
        %v564 = vadd.f32 %v517, %v558
        %v565 = vadd.f32 %v518, %v559
        %v566 = vadd.f32 %v519, %v560
        %v567 = vadd.f32 %v520, %v561
        %v568 = vld [vmem:[%s2] sm:$0x1]
        %v570 = vperm.slane %v568, 0
        %v572 = vadd.f32 %v562, %v570
        %v573 = vadd.f32 %v563, %v570
        %v574 = vadd.f32 %v564, %v570
        %v575 = vadd.f32 %v565, %v570
        %v576 = vadd.f32 %v566, %v570
        %v577 = vadd.f32 %v567, %v570
        %v578 = vmax.f32 %v572, 0.0
        %v579 = vmax.f32 %v573, 0.0
        %v580 = vmax.f32 %v574, 0.0
        %v581 = vmax.f32 %v575, 0.0
        %v582 = vmax.f32 %v576, 0.0
        %v583 = vmax.f32 %v577, 0.0
        %v590 = vrot.slane %v578, 7
        %v591 = vrot.slane %v579, 7
        %v592 = vsel %vm383, %v590, %v591
        %v593 = vrot.slane %v580, 7
        %v594 = vsel %vm383, %v591, %v593
        %v595 = vrot.slane %v581, 7
        %v596 = vsel %vm383, %v593, %v595
        %v597 = vrot.slane %v582, 7
        %v598 = vsel %vm383, %v595, %v597
        %v599 = vrot.slane %v583, 7
        %v600 = vsel %vm383, %v597, %v599
        %v607 = vsel %vm383, 0.0, %v590
        %v608 = vrot.slane %v578, 1
        %v609 = vrot.slane %v579, 1
        %v610 = vsel %vm402, %v608, %v609
        %v611 = vrot.slane %v580, 1
        %v612 = vsel %vm402, %v609, %v611
        %v613 = vrot.slane %v581, 1
        %v614 = vsel %vm402, %v611, %v613
        %v615 = vrot.slane %v582, 1
        %v616 = vsel %vm402, %v613, %v615
        %v617 = vrot.slane %v583, 1
        %v618 = vsel %vm402, %v615, %v617
        %v625 = vsel %vm402, %v617, 0.0
        %v626 = vsel %vm424, 0.0, %v607
        %v627 = vsel %vm425, 0.0, %v592
        %v628 = vsel %vm424, 0.0, %v594
        %v629 = vsel %vm425, 0.0, %v596
        %v630 = vsel %vm424, 0.0, %v598
        %v631 = vsel %vm425, 0.0, %v600
        %v632 = vsel %vm432, 0.0, %v610
        %v633 = vsel %vm433, 0.0, %v612
        %v634 = vsel %vm432, 0.0, %v614
        %v635 = vsel %vm433, 0.0, %v616
        %v636 = vsel %vm432, 0.0, %v618
        %v637 = vsel %vm433, 0.0, %v625
        %v638 = vpack.c.bf16 %v627, %v626
        %v639 = vpack.c.bf16 %v629, %v628
        %v640 = vpack.c.bf16 %v631, %v630
        %v641 = vld [vmem:[#allocation2] sm:$0xf]
        %v642 = vld [vmem:[#allocation2 + $0x4] sm:$0xf]
        %v643 = vld [vmem:[#allocation2 + $0x8] sm:$0xf]
        %v644 = vld [vmem:[#allocation2 + $0xc] sm:$0xf]
        %v645 = vpack.c.bf16 %v579, %v578
        %v646 = vpack.c.bf16 %v581, %v580
        %v647 = vpack.c.bf16 %v583, %v582
        %s648 = scalar_lea.vmem [#allocation2], 16
        %v649 = vld [vmem:[%s648] sm:$0xf]
        %v650 = vld [vmem:[%s648 + $0x4] sm:$0xf]
        %v651 = vld [vmem:[%s648 + $0x8] sm:$0xf]
        %v652 = vld [vmem:[%s648 + $0xc] sm:$0xf]
        %v657 = vunpack.c.l.b16 %v649
        %v658 = vunpack.c.l.b16 %v650
        %v659 = vunpack.c.l.b16 %v651
        %v660 = vunpack.c.l.b16 %v652
        %v661 = vpack.c.b16 %v658, %v657
        %v662 = vpack.c.b16 %v660, %v659
        %vm665 = vcmask 261120
        %v667 = vsel %vm665, %v645, 0
        %v670 = vsel %vm665, %v646, 0
        %v673 = vsel %vm665, %v647, 0
        %675 = vmatpush.bf16.msra.mxu0 0
        %676 = vmatpush.bf16.msra.mxu0 0
        %677 = vmatpush.bf16.msra.mxu0 0
        %678 = vmatpush.bf16.msra.mxu0 0
        %679 = vmatpush.bf16.msra.mxu0 0
        %680 = vmatpush.bf16.msra.mxu0 0
        %681 = vmatpush.bf16.msra.mxu0 %v662
        %682 = vmatpush.bf16.msra.mxu0 %v661
        %683 = vmatmul.bf16.gmra.mxu0 %v667
        %v684 = vpop.f32.mrf.mxu0
        %v685 = vadd.f32 0.0, %v684
        %v686 = vpop.f32.mrf.mxu0
        %v687 = vadd.f32 0.0, %v686
        %688 = vmatmul.bf16.gmra.mxu0 %v670
        %v689 = vpop.f32.mrf.mxu0
        %v690 = vadd.f32 0.0, %v689
        %v691 = vpop.f32.mrf.mxu0
        %v692 = vadd.f32 0.0, %v691
        %693 = vmatmul.bf16.gmra.mxu0 %v673
        %v694 = vpop.f32.mrf.mxu0
        %v695 = vadd.f32 0.0, %v694
        %v696 = vpop.f32.mrf.mxu0
        %v697 = vadd.f32 0.0, %v696
        %698 = vdwg.mxu0
        %v703 = vunpack.c.l.b16 %v641
        %v704 = vunpack.c.l.b16 %v642
        %v705 = vunpack.c.l.b16 %v643
        %v706 = vunpack.c.l.b16 %v644
        %v707 = vpack.c.b16 %v704, %v703
        %v708 = vpack.c.b16 %v706, %v705
        %v712 = vsel %vm665, %v638, 0
        %v715 = vsel %vm665, %v639, 0
        %v718 = vsel %vm665, %v640, 0
        %720 = vmatpush.bf16.msra.mxu0 0
        %721 = vmatpush.bf16.msra.mxu0 0
        %722 = vmatpush.bf16.msra.mxu0 0
        %723 = vmatpush.bf16.msra.mxu0 0
        %724 = vmatpush.bf16.msra.mxu0 0
        %725 = vmatpush.bf16.msra.mxu0 0
        %726 = vmatpush.bf16.msra.mxu0 %v708
        %727 = vmatpush.bf16.msra.mxu0 %v707
        %728 = vmatmul.bf16.gmra.mxu0 %v712
        %v729 = vpop.f32.mrf.mxu0
        %v730 = vadd.f32 %v685, %v729
        %v731 = vpop.f32.mrf.mxu0
        %v732 = vadd.f32 %v687, %v731
        %733 = vmatmul.bf16.gmra.mxu0 %v715
        %v734 = vpop.f32.mrf.mxu0
        %v735 = vadd.f32 %v690, %v734
        %v736 = vpop.f32.mrf.mxu0
        %v737 = vadd.f32 %v692, %v736
        %738 = vmatmul.bf16.gmra.mxu0 %v718
        %v739 = vpop.f32.mrf.mxu0
        %v740 = vadd.f32 %v695, %v739
        %v741 = vpop.f32.mrf.mxu0
        %v742 = vadd.f32 %v697, %v741
        %743 = vdwg.mxu0
        %v744 = vpack.c.bf16 %v633, %v632
        %v745 = vpack.c.bf16 %v635, %v634
        %v746 = vpack.c.bf16 %v637, %v636
        %s747 = scalar_lea.vmem [#allocation2], 32
        %v748 = vld [vmem:[%s747] sm:$0xf]
        %v749 = vld [vmem:[%s747 + $0x4] sm:$0xf]
        %v750 = vld [vmem:[%s747 + $0x8] sm:$0xf]
        %v751 = vld [vmem:[%s747 + $0xc] sm:$0xf]
        %v756 = vunpack.c.l.b16 %v748
        %v757 = vunpack.c.l.b16 %v749
        %v758 = vunpack.c.l.b16 %v750
        %v759 = vunpack.c.l.b16 %v751
        %v760 = vpack.c.b16 %v757, %v756
        %v761 = vpack.c.b16 %v759, %v758
        %v765 = vsel %vm665, %v744, 0
        %v768 = vsel %vm665, %v745, 0
        %v771 = vsel %vm665, %v746, 0
        %773 = vmatpush.bf16.msra.mxu0 0
        %774 = vmatpush.bf16.msra.mxu0 0
        %775 = vmatpush.bf16.msra.mxu0 0
        %776 = vmatpush.bf16.msra.mxu0 0
        %777 = vmatpush.bf16.msra.mxu0 0
        %778 = vmatpush.bf16.msra.mxu0 0
        %779 = vmatpush.bf16.msra.mxu0 %v761
        %780 = vmatpush.bf16.msra.mxu0 %v760
        %781 = vmatmul.bf16.gmra.mxu0 %v765
        %v782 = vpop.f32.mrf.mxu0
        %v783 = vadd.f32 0.0, %v782
        %v784 = vpop.f32.mrf.mxu0
        %v785 = vadd.f32 0.0, %v784
        %786 = vmatmul.bf16.gmra.mxu0 %v768
        %v787 = vpop.f32.mrf.mxu0
        %v788 = vadd.f32 0.0, %v787
        %v789 = vpop.f32.mrf.mxu0
        %v790 = vadd.f32 0.0, %v789
        %791 = vmatmul.bf16.gmra.mxu0 %v771
        %v792 = vpop.f32.mrf.mxu0
        %v793 = vadd.f32 0.0, %v792
        %v794 = vpop.f32.mrf.mxu0
        %v795 = vadd.f32 0.0, %v794
        %796 = vdwg.mxu0
        %v797 = vadd.f32 %v730, %v783
        %v798 = vadd.f32 %v732, %v785
        %v799 = vadd.f32 %v735, %v788
        %v800 = vadd.f32 %v737, %v790
        %v801 = vadd.f32 %v740, %v793
        %v802 = vadd.f32 %v742, %v795
        %v803 = vld [vmem:[%s4] sm:$0x1]
        %v805 = vperm.slane %v803, 0
        %v807 = vadd.f32 %v797, %v805
        %v808 = vadd.f32 %v798, %v805
        %v809 = vadd.f32 %v799, %v805
        %v810 = vadd.f32 %v800, %v805
        %v811 = vadd.f32 %v801, %v805
        %v812 = vadd.f32 %v802, %v805
        %v813 = vmax.f32 %v807, 0.0
        %v814 = vmax.f32 %v808, 0.0
        %v815 = vmax.f32 %v809, 0.0
        %v816 = vmax.f32 %v810, 0.0
        %v817 = vmax.f32 %v811, 0.0
        %v818 = vmax.f32 %v812, 0.0
        %v825 = vrot.slane %v813, 7
        %v826 = vrot.slane %v814, 7
        %v827 = vsel %vm383, %v825, %v826
        %v828 = vrot.slane %v815, 7
        %v829 = vsel %vm383, %v826, %v828
        %v830 = vrot.slane %v816, 7
        %v831 = vsel %vm383, %v828, %v830
        %v832 = vrot.slane %v817, 7
        %v833 = vsel %vm383, %v830, %v832
        %v834 = vrot.slane %v818, 7
        %v835 = vsel %vm383, %v832, %v834
        %v842 = vsel %vm383, 0.0, %v825
        %v843 = vrot.slane %v813, 1
        %v844 = vrot.slane %v814, 1
        %v845 = vsel %vm402, %v843, %v844
        %v846 = vrot.slane %v815, 1
        %v847 = vsel %vm402, %v844, %v846
        %v848 = vrot.slane %v816, 1
        %v849 = vsel %vm402, %v846, %v848
        %v850 = vrot.slane %v817, 1
        %v851 = vsel %vm402, %v848, %v850
        %v852 = vrot.slane %v818, 1
        %v853 = vsel %vm402, %v850, %v852
        %v860 = vsel %vm402, %v852, 0.0
        %v861 = vsel %vm424, 0.0, %v842
        %v862 = vsel %vm425, 0.0, %v827
        %v863 = vsel %vm424, 0.0, %v829
        %v864 = vsel %vm425, 0.0, %v831
        %v865 = vsel %vm424, 0.0, %v833
        %v866 = vsel %vm425, 0.0, %v835
        %v867 = vsel %vm432, 0.0, %v845
        %v868 = vsel %vm433, 0.0, %v847
        %v869 = vsel %vm432, 0.0, %v849
        %v870 = vsel %vm433, 0.0, %v851
        %v871 = vsel %vm432, 0.0, %v853
        %v872 = vsel %vm433, 0.0, %v860
        %v873 = vpack.c.bf16 %v862, %v861
        %v874 = vpack.c.bf16 %v864, %v863
        %v875 = vpack.c.bf16 %v866, %v865
        %v876 = vld [vmem:[%s5] sm:$0xf]
        %v877 = vld [vmem:[%s5 + $0x4] sm:$0xf]
        %v878 = vld [vmem:[%s5 + $0x8] sm:$0xf]
        %v879 = vld [vmem:[%s5 + $0xc] sm:$0xf]
        %v880 = vld [vmem:[%s5 + $0x10] sm:$0xf]
        %v881 = vld [vmem:[%s5 + $0x14] sm:$0xf]
        %v882 = vld [vmem:[%s5 + $0x18] sm:$0xf]
        %v883 = vld [vmem:[%s5 + $0x1c] sm:$0xf]
        %v884 = vpack.c.bf16 %v814, %v813
        %v885 = vpack.c.bf16 %v816, %v815
        %v886 = vpack.c.bf16 %v818, %v817
        %s887 = scalar_lea.vmem %s5, 32
        %v888 = vld [vmem:[%s887] sm:$0xf]
        %v889 = vld [vmem:[%s887 + $0x4] sm:$0xf]
        %v890 = vld [vmem:[%s887 + $0x8] sm:$0xf]
        %v891 = vld [vmem:[%s887 + $0xc] sm:$0xf]
        %v892 = vld [vmem:[%s887 + $0x10] sm:$0xf]
        %v893 = vld [vmem:[%s887 + $0x14] sm:$0xf]
        %v894 = vld [vmem:[%s887 + $0x18] sm:$0xf]
        %v895 = vld [vmem:[%s887 + $0x1c] sm:$0xf]
        %v904 = vunpack.c.l.b16 %v888
        %v905 = vunpack.c.l.b16 %v889
        %v906 = vunpack.c.l.b16 %v890
        %v907 = vunpack.c.l.b16 %v891
        %v908 = vunpack.c.l.b16 %v892
        %v909 = vunpack.c.l.b16 %v893
        %v910 = vunpack.c.l.b16 %v894
        %v911 = vunpack.c.l.b16 %v895
        %v912 = vpack.c.b16 %v905, %v904
        %v913 = vpack.c.b16 %v907, %v906
        %v914 = vpack.c.b16 %v909, %v908
        %v915 = vpack.c.b16 %v911, %v910
        %vm920 = vcmask 523264
        %v922 = vsel %vm920, %v884, 0
        %v925 = vsel %vm920, %v885, 0
        %v928 = vsel %vm920, %v886, 0
        %930 = vmatpush.bf16.msra.mxu0 0
        %931 = vmatpush.bf16.msra.mxu0 0
        %932 = vmatpush.bf16.msra.mxu0 0
        %933 = vmatpush.bf16.msra.mxu0 0
        %934 = vmatpush.bf16.msra.mxu0 %v915
        %935 = vmatpush.bf16.msra.mxu0 %v914
        %936 = vmatpush.bf16.msra.mxu0 %v913
        %937 = vmatpush.bf16.msra.mxu0 %v912
        %938 = vmatmul.bf16.gmra.mxu0 %v922
        %v939 = vpop.f32.mrf.mxu0
        %v940 = vadd.f32 0.0, %v939
        %v941 = vpop.f32.mrf.mxu0
        %v942 = vadd.f32 0.0, %v941
        %943 = vmatmul.bf16.gmra.mxu0 %v925
        %v944 = vpop.f32.mrf.mxu0
        %v945 = vadd.f32 0.0, %v944
        %v946 = vpop.f32.mrf.mxu0
        %v947 = vadd.f32 0.0, %v946
        %948 = vmatmul.bf16.gmra.mxu0 %v928
        %v949 = vpop.f32.mrf.mxu0
        %v950 = vadd.f32 0.0, %v949
        %v951 = vpop.f32.mrf.mxu0
        %v952 = vadd.f32 0.0, %v951
        %953 = vdwg.mxu0
        %v962 = vunpack.c.l.b16 %v876
        %v963 = vunpack.c.l.b16 %v877
        %v964 = vunpack.c.l.b16 %v878
        %v965 = vunpack.c.l.b16 %v879
        %v966 = vunpack.c.l.b16 %v880
        %v967 = vunpack.c.l.b16 %v881
        %v968 = vunpack.c.l.b16 %v882
        %v969 = vunpack.c.l.b16 %v883
        %v970 = vpack.c.b16 %v963, %v962
        %v971 = vpack.c.b16 %v965, %v964
        %v972 = vpack.c.b16 %v967, %v966
        %v973 = vpack.c.b16 %v969, %v968
        %v979 = vsel %vm920, %v873, 0
        %v982 = vsel %vm920, %v874, 0
        %v985 = vsel %vm920, %v875, 0
        %987 = vmatpush.bf16.msra.mxu0 0
        %988 = vmatpush.bf16.msra.mxu0 0
        %989 = vmatpush.bf16.msra.mxu0 0
        %990 = vmatpush.bf16.msra.mxu0 0
        %991 = vmatpush.bf16.msra.mxu0 %v973
        %992 = vmatpush.bf16.msra.mxu0 %v972
        %993 = vmatpush.bf16.msra.mxu0 %v971
        %994 = vmatpush.bf16.msra.mxu0 %v970
        %995 = vmatmul.bf16.gmra.mxu0 %v979
        %v996 = vpop.f32.mrf.mxu0
        %v997 = vadd.f32 %v940, %v996
        %v998 = vpop.f32.mrf.mxu0
        %v999 = vadd.f32 %v942, %v998
        %1000 = vmatmul.bf16.gmra.mxu0 %v982
        %v1001 = vpop.f32.mrf.mxu0
        %v1002 = vadd.f32 %v945, %v1001
        %v1003 = vpop.f32.mrf.mxu0
        %v1004 = vadd.f32 %v947, %v1003
        %1005 = vmatmul.bf16.gmra.mxu0 %v985
        %v1006 = vpop.f32.mrf.mxu0
        %v1007 = vadd.f32 %v950, %v1006
        %v1008 = vpop.f32.mrf.mxu0
        %v1009 = vadd.f32 %v952, %v1008
        %1010 = vdwg.mxu0
        %v1011 = vpack.c.bf16 %v868, %v867
        %v1012 = vpack.c.bf16 %v870, %v869
        %v1013 = vpack.c.bf16 %v872, %v871
        %s1014 = scalar_lea.vmem %s5, 64
        %v1015 = vld [vmem:[%s1014] sm:$0xf]
        %v1016 = vld [vmem:[%s1014 + $0x4] sm:$0xf]
        %v1017 = vld [vmem:[%s1014 + $0x8] sm:$0xf]
        %v1018 = vld [vmem:[%s1014 + $0xc] sm:$0xf]
        %v1019 = vld [vmem:[%s1014 + $0x10] sm:$0xf]
        %v1020 = vld [vmem:[%s1014 + $0x14] sm:$0xf]
        %v1021 = vld [vmem:[%s1014 + $0x18] sm:$0xf]
        %v1022 = vld [vmem:[%s1014 + $0x1c] sm:$0xf]
        %v1031 = vunpack.c.l.b16 %v1015
        %v1032 = vunpack.c.l.b16 %v1016
        %v1033 = vunpack.c.l.b16 %v1017
        %v1034 = vunpack.c.l.b16 %v1018
        %v1035 = vunpack.c.l.b16 %v1019
        %v1036 = vunpack.c.l.b16 %v1020
        %v1037 = vunpack.c.l.b16 %v1021
        %v1038 = vunpack.c.l.b16 %v1022
        %v1039 = vpack.c.b16 %v1032, %v1031
        %v1040 = vpack.c.b16 %v1034, %v1033
        %v1041 = vpack.c.b16 %v1036, %v1035
        %v1042 = vpack.c.b16 %v1038, %v1037
        %v1048 = vsel %vm920, %v1011, 0
        %v1051 = vsel %vm920, %v1012, 0
        %v1054 = vsel %vm920, %v1013, 0
        %1056 = vmatpush.bf16.msra.mxu0 0
        %1057 = vmatpush.bf16.msra.mxu0 0
        %1058 = vmatpush.bf16.msra.mxu0 0
        %1059 = vmatpush.bf16.msra.mxu0 0
        %1060 = vmatpush.bf16.msra.mxu0 %v1042
        %1061 = vmatpush.bf16.msra.mxu0 %v1041
        %1062 = vmatpush.bf16.msra.mxu0 %v1040
        %1063 = vmatpush.bf16.msra.mxu0 %v1039
        %1064 = vmatmul.bf16.gmra.mxu0 %v1048
        %v1065 = vpop.f32.mrf.mxu0
        %v1066 = vadd.f32 0.0, %v1065
        %v1067 = vpop.f32.mrf.mxu0
        %v1068 = vadd.f32 0.0, %v1067
        %1069 = vmatmul.bf16.gmra.mxu0 %v1051
        %v1070 = vpop.f32.mrf.mxu0
        %v1071 = vadd.f32 0.0, %v1070
        %v1072 = vpop.f32.mrf.mxu0
        %v1073 = vadd.f32 0.0, %v1072
        %1074 = vmatmul.bf16.gmra.mxu0 %v1054
        %v1075 = vpop.f32.mrf.mxu0
        %v1076 = vadd.f32 0.0, %v1075
        %v1077 = vpop.f32.mrf.mxu0
        %v1078 = vadd.f32 0.0, %v1077
        %1079 = vdwg.mxu0
        %v1080 = vadd.f32 %v997, %v1066
        %v1081 = vadd.f32 %v999, %v1068
        %v1082 = vadd.f32 %v1002, %v1071
        %v1083 = vadd.f32 %v1004, %v1073
        %v1084 = vadd.f32 %v1007, %v1076
        %v1085 = vadd.f32 %v1009, %v1078
        %v1086 = vld [vmem:[%s6] sm:$0x1]
        %v1088 = vperm.slane %v1086, 0
        %v1090 = vadd.f32 %v1080, %v1088
        %v1091 = vadd.f32 %v1081, %v1088
        %v1092 = vadd.f32 %v1082, %v1088
        %v1093 = vadd.f32 %v1083, %v1088
        %v1094 = vadd.f32 %v1084, %v1088
        %v1095 = vadd.f32 %v1085, %v1088
        %v1096 = vmax.f32 %v1090, 0.0
        %v1097 = vmax.f32 %v1091, 0.0
        %v1098 = vmax.f32 %v1092, 0.0
        %v1099 = vmax.f32 %v1093, 0.0
        %v1100 = vmax.f32 %v1094, 0.0
        %v1101 = vmax.f32 %v1095, 0.0
        %v1102 = vadd.f32 %v1096, %v1097
        %v1103 = vrot.slane %v1102, 4
        %v1104 = vadd.f32 %v1102, %v1103
        %v1105 = vrot.slane %v1104, 2
        %v1106 = vadd.f32 %v1104, %v1105
        %v1107 = vrot.slane %v1106, 1
        %v1108 = vadd.f32 %v1106, %v1107
        %v1109 = vadd.f32 %v1098, %v1099
        %v1110 = vrot.slane %v1109, 4
        %v1111 = vadd.f32 %v1109, %v1110
        %v1112 = vrot.slane %v1111, 2
        %v1113 = vadd.f32 %v1111, %v1112
        %v1114 = vrot.slane %v1113, 1
        %v1115 = vadd.f32 %v1113, %v1114
        %v1116 = vadd.f32 %v1100, %v1101
        %v1117 = vrot.slane %v1116, 4
        %v1118 = vadd.f32 %v1116, %v1117
        %v1119 = vrot.slane %v1118, 2
        %v1120 = vadd.f32 %v1118, %v1119
        %v1121 = vrot.slane %v1120, 1
        %v1122 = vadd.f32 %v1120, %v1121
        %v1123 = vrcp.pop 16.0
        %v1124 = vmul.f32 16.0, %v1123
        %v1125 = vsub.f32 1.0, %v1124
        %v1126 = vmul.f32 %v1123, %v1125
        %v1127 = vadd.f32 %v1123, %v1126
        %vm1128 = vweird.f32 %v1123
        %v1129 = vsel %vm1128, %v1123, %v1127
        %v1130 = vmul.f32 %v1108, %v1129
        %v1131 = vmul.f32 %v1115, %v1129
        %v1132 = vmul.f32 %v1122, %v1129
        %v1133 = vpack.c.bf16 %v1130, %v1130
        %v1134 = vpack.c.bf16 %v1131, %v1131
        %v1135 = vpack.c.bf16 %v1132, %v1132
        %v1136 = vld [vmem:[#allocation4] sm:$0xf]
        %v1137 = vld [vmem:[#allocation4 + $0x4] sm:$0xf]
        %v1138 = vld [vmem:[#allocation4 + $0x8] sm:$0xf]
        %v1139 = vld [vmem:[#allocation4 + $0xc] sm:$0xf]
        %v1140 = vld [vmem:[#allocation4 + $0x10] sm:$0xf]
        %v1141 = vld [vmem:[#allocation4 + $0x14] sm:$0xf]
        %v1142 = vld [vmem:[#allocation4 + $0x18] sm:$0xf]
        %v1143 = vld [vmem:[#allocation4 + $0x1c] sm:$0xf]
        %v1144 = vld [vmem:[#allocation4 + $0x20] sm:$0xf]
        %v1145 = vld [vmem:[#allocation4 + $0x24] sm:$0xf]
        %v1146 = vld [vmem:[#allocation4 + $0x28] sm:$0xf]
        %v1147 = vld [vmem:[#allocation4 + $0x2c] sm:$0xf]
        %v1148 = vld [vmem:[#allocation4 + $0x30] sm:$0xf]
        %v1149 = vld [vmem:[#allocation4 + $0x34] sm:$0xf]
        %v1150 = vld [vmem:[#allocation4 + $0x38] sm:$0xf]
        %v1151 = vld [vmem:[#allocation4 + $0x3c] sm:$0xf]
        %v1152 = vld [vmem:[%s8] sm:$0x1]
        %v1154 = vperm.slane %v1152, 0
        %v1159 = vunpack.c.l.b16 %v1133
        %v1160 = vunpack.c.l.b16 %v1134
        %v1161 = vunpack.c.l.b16 %v1135
        %vm1162 = vcmask 1041409
        %v1163 = vsel %vm1162, %v1160, %v1159
        %vm1164 = vcmask 1042434
        %v1165 = vsel %vm1164, %v1161, %v1163
        %v1166 = vpack.c.b16 %v1165, %v1165
        %v1184 = vunpack.c.l.b16 %v1136
        %v1185 = vunpack.c.l.b16 %v1137
        %v1186 = vunpack.c.l.b16 %v1138
        %v1187 = vunpack.c.l.b16 %v1139
        %v1188 = vunpack.c.l.b16 %v1140
        %v1189 = vunpack.c.l.b16 %v1141
        %v1190 = vunpack.c.l.b16 %v1142
        %v1191 = vunpack.c.l.b16 %v1143
        %v1192 = vunpack.c.l.b16 %v1144
        %v1193 = vunpack.c.l.b16 %v1145
        %v1194 = vunpack.c.l.b16 %v1146
        %v1195 = vunpack.c.l.b16 %v1147
        %v1196 = vunpack.c.l.b16 %v1148
        %v1197 = vunpack.c.l.b16 %v1149
        %v1198 = vunpack.c.l.b16 %v1150
        %v1199 = vunpack.c.l.b16 %v1151
        %v1200 = vpack.c.b16 %v1185, %v1184
        %v1201 = vpack.c.b16 %v1187, %v1186
        %v1202 = vpack.c.b16 %v1189, %v1188
        %v1203 = vpack.c.b16 %v1191, %v1190
        %v1204 = vpack.c.b16 %v1193, %v1192
        %v1205 = vpack.c.b16 %v1195, %v1194
        %v1206 = vpack.c.b16 %v1197, %v1196
        %v1207 = vpack.c.b16 %v1199, %v1198
        %1216 = vmatpush.bf16.msra.mxu0 %v1207
        %1217 = vmatpush.bf16.msra.mxu0 %v1206
        %1218 = vmatpush.bf16.msra.mxu0 %v1205
        %1219 = vmatpush.bf16.msra.mxu0 %v1204
        %1220 = vmatpush.bf16.msra.mxu0 %v1203
        %1221 = vmatpush.bf16.msra.mxu0 %v1202
        %1222 = vmatpush.bf16.msra.mxu0 %v1201
        %1223 = vmatpush.bf16.msra.mxu0 %v1200
        %1224 = vmatmul.bf16.gmra.mxu0 %v1166
        %v1225 = vpop.f32.mrf.mxu0
        %v1226 = vadd.f32 %v1154, %v1225
        %v1227 = vpop.f32.mrf.mxu0
        %1228 = vdwg.mxu0
        %1229 = vst [vmem:[%s369] sm:$0x7] %v1226
        %p1230 = scmp.lt.s32.totalorder %s22, 1
        %s1231 = scalar_select %p1230, %s22, 1
        %s1232 = smul.addr %s1231, 4
        %s1233 = scalar_lea.vmem %s9, %s1232
        // Predicated region
        $region65: #{tpu_custom_call.1} parent=55 // pred_check
          %p1234 = pneg %p234
        $region66: #{tpu_custom_call.1} parent=55 // pred_check_branch
          %1236 = sbr.rel (%p1234) target = $region68
        $region67: #{tpu_custom_call.1} parent=55 // pred_region
          _
        $region68: #{tpu_custom_call.1} parent=55 // pred_fallthru
          _
      $region56: #{tpu_custom_call.1} parent=5 // pred_fallthru
        _
      %p1237 = scmp.le.s32.totalorder 2, %s17
      // Predicated region
      $region69: #{tpu_custom_call.1} parent=5 // pred_check
        %p1238 = pneg %p1237
      $region70: #{tpu_custom_call.1} parent=5 // pred_check_branch
        %1240 = sbr.rel (%p1238) target = $region72
      $region71: #{tpu_custom_call.1} parent=5 // pred_region
        %s1241 = ssub.s32 %s17, 2
        // Predicated region
        $region73: #{tpu_custom_call.1} parent=71 // pred_check
          %p1242 = pneg %p240
        $region74: #{tpu_custom_call.1} parent=71 // pred_check_branch
          %1244 = sbr.rel (%p1242) target = $region76
        $region75: #{tpu_custom_call.1} parent=71 // pred_region
          %p1245 = scmp.lt.s32.totalorder %s23, 1
          %s1246 = scalar_select %p1245, %s23, 1
          %s1247 = smul.addr %s1246, 4
          %s1248 = scalar_lea.vmem %s9, %s1247
        $region76: #{tpu_custom_call.1} parent=71 // pred_fallthru
          _
      $region72: #{tpu_custom_call.1} parent=5 // pred_fallthru
        _
    $region6: #{tpu_custom_call.1} parent=1 // loop_footer
      %s21 = sadd.s32 1, %s17
    $region7: #{tpu_custom_call.1} parent=1 // loop_footer_branch
      %16 = sbr.rel target = $region3
    $region8: #{tpu_custom_call.1} parent=1 // loop_exit
      _
    %1249 = vsyncpa [#allocation3], 1
    %s1250 = scalar_lea.sflag [#allocation3], 1
    %1251 = vsyncpa %s1250, 1
    %1252 = vsyncpa [#allocation5], 1

</llo_original>
